<compile_context>
chip_gen: v5e
topology: v5e:2x2
jax: 0.10.0
libtpu: 0.0.40
codegen_flags: <defaults>
</compile_context>

<pallas_src>
import functools
import numpy as np

import jax
import jax.numpy as jnp
from jax.experimental import pallas as pl
from jax.experimental.pallas import tpu as pltpu

PI_ROTATE = 3.141592653589793
# NOTE: intentionally matches the original repo's constant (digits transposed vs pi).
PI_PROTATE = 3.1415926235897933

_MIB = 1024 * 1024


def _cdiv(a, b):
    return -(-a // b)


def _round_up(x, m):
    return _cdiv(x, m) * m


@functools.lru_cache(maxsize=1)
def _chip_info():
    """Returns (vmem_capacity_bytes or None, bf16 VPU/EUP available)."""
    vmem_cap = None
    try:
        vmem_cap = int(pltpu.get_tpu_info().vmem_capacity_bytes)
    except Exception:
        vmem_cap = None
    kind = ""
    try:
        kind = jax.devices()[0].device_kind.lower()
    except Exception:
        kind = ""
    bf16_vpu = any(tag in kind for tag in ("v6", "v7", "tpu7"))
    return vmem_cap, bf16_vpu


# ----------------------------------------------------------------------------- kernel
def _score_kernel(*refs, model_name, mode, gamma, inv_scale, modulus,
                  compute_dtype, split_reim):
    out_ref = refs[-1]
    f32 = jnp.float32
    cdt = compute_dtype

    if split_reim:
        # Lane-aligned re/im halves arrive as separate blocks (no in-kernel lane slice).
        re_h = refs[0][...].astype(cdt)
        im_h = refs[1][...].astype(cdt)
        re_r = refs[2][...].astype(cdt)
        im_r = refs[3][...].astype(cdt)
        re_t = refs[4][...].astype(cdt)
        im_t = refs[5][...].astype(cdt)
        if model_name == 'ComplEx':
            if mode == 'head-batch':
                re_s = re_r * re_t + im_r * im_t
                im_s = re_r * im_t - im_r * re_t
                s = re_h * re_s + im_h * im_s
            else:
                re_s = re_h * re_r - im_h * im_r
                im_s = re_h * im_r + im_h * re_r
                s = re_s * re_t + im_s * im_t
            score = jnp.sum(s.astype(f32), axis=2)
        elif model_name == 'RotatE':
            # re_r/im_r already carry cos/sin of the relation phase (hoisted in wrapper).
            if mode == 'head-batch':
                re_s = re_r * re_t + im_r * im_t - re_h
                im_s = re_r * im_t - im_r * re_t - im_h
            else:
                re_s = re_h * re_r - im_h * im_r - re_t
                im_s = re_h * im_r + im_h * re_r - im_t
            re_s = re_s.astype(f32)
            im_s = im_s.astype(f32)
            score = gamma - jnp.sum(jnp.sqrt(re_s * re_s + im_s * im_s), axis=2)
        else:
            raise ValueError('split path only for ComplEx/RotatE')
        out_ref[...] = score.astype(out_ref.dtype)
        return

    head_ref, rel_ref, tail_ref = refs[0], refs[1], refs[2]
    head = head_ref[...].astype(cdt)
    rel = rel_ref[...].astype(cdt)
    tail = tail_ref[...].astype(cdt)

    if model_name == 'TransE':
        s = head + (rel - tail) if mode == 'head-batch' else head + rel - tail
        score = gamma - jnp.sum(jnp.abs(s).astype(f32), axis=2)

    elif model_name == 'DistMult':
        s = head * (rel * tail) if mode == 'head-batch' else head * rel * tail
        score = jnp.sum(s.astype(f32), axis=2)

    elif model_name == 'ComplEx':
        d = head.shape[2] // 2
        re_h, im_h = head[:, :, :d], head[:, :, d:]
        re_r, im_r = rel[:, :, :d], rel[:, :, d:]
        re_t, im_t = tail[:, :, :d], tail[:, :, d:]
        if mode == 'head-batch':
            re_s = re_r * re_t + im_r * im_t
            im_s = re_r * im_t - im_r * re_t
            s = re_h * re_s + im_h * im_s
        else:
            re_s = re_h * re_r - im_h * im_r
            im_s = re_h * im_r + im_h * re_r
            s = re_s * re_t + im_s * im_t
        score = jnp.sum(s.astype(f32), axis=2)

    elif model_name == 'RotatE':
        # rel already carries [cos(phase_r), sin(phase_r)] (hoisted to the wrapper).
        d = head.shape[2] // 2
        re_h, im_h = head[:, :, :d], head[:, :, d:]
        re_t, im_t = tail[:, :, :d], tail[:, :, d:]
        re_r, im_r = rel[:, :, :d], rel[:, :, d:]
        if mode == 'head-batch':
            re_s = re_r * re_t + im_r * im_t - re_h
            im_s = re_r * im_t - im_r * re_t - im_h
        else:
            re_s = re_h * re_r - im_h * im_r - re_t
            im_s = re_h * im_r + im_h * re_r - im_t
        re_s = re_s.astype(f32)
        im_s = im_s.astype(f32)
        score = gamma - jnp.sum(jnp.sqrt(re_s * re_s + im_s * im_s), axis=2)

    elif model_name == 'pRotatE':
        # fold the three phase divides into one multiply on the combined term
        s = head + (rel - tail) if mode == 'head-batch' else head + rel - tail
        s = jnp.abs(jnp.sin(s.astype(f32) * inv_scale))
        score = gamma - jnp.sum(s, axis=2) * modulus

    else:
        raise ValueError('model %s not supported' % model_name)

    out_ref[...] = score.astype(out_ref.dtype)


def _tile_plan(B, N, D, itemsize, *, compute_bf16, heavy, both_streamed, vmem_cap):
    """Pick (TB, TN, vmem_limit) sized to the detected TPU generation."""
    TB = B if B <= 8 else 8
    if vmem_cap is None:                         # unknown chip: previous known-good setting
        per_buf, vmem_limit = 8 * _MIB, 32 * _MIB
    elif vmem_cap >= 96 * _MIB:                  # v5e / v6e: 128 MiB physical VMEM
        per_buf, vmem_limit = 12 * _MIB, 80 * _MIB
    else:                                        # v7x-like: 64 MiB physical VMEM per TC
        per_buf, vmem_limit = 8 * _MIB, 48 * _MIB
    if heavy:                                    # ComplEx/RotatE hold more block temporaries
        per_buf //= 2
    if both_streamed:                            # two double-buffered big operands
        per_buf //= 2
    # size tiles by the f32 working set unless the kernel really computes in bf16
    eff_item = itemsize if compute_bf16 else max(itemsize, 4)

    if N < 128:
        TN = N                                   # full extent -> no (8,128) constraint
    else:
        tn_cap = per_buf // max(1, TB * D * eff_item)
        TN = max(128, (tn_cap // 128) * 128)     # lane-dense multiple of 128
        TN = min(TN, _round_up(N, 128))
        # v7x has 2 TensorCores: make sure at least one "parallel" axis has >= 2 blocks
        # (a 2-step grid is a harmless sequential loop on single-TC v5e/v6e).
        if _cdiv(B, TB) == 1 and _cdiv(N, TN) == 1 and N >= 256:
            TN = max(128, _round_up(_cdiv(N, 2), 128))
    return TB, TN, vmem_limit


def pallas_score(head, relation, tail, *, model_name, mode, gamma,
                 embedding_range, modulus=None):
    """head: (B, Nh, D); relation: (B, 1, Dr); tail: (B, Nt, D) -> scores (B, max(Nh, Nt))."""
    B, Nh, D = head.shape
    _, Nt, _ = tail.shape
    if Nh > 1 and Nt > 1 and Nh != Nt:
        raise ValueError('head and tail negative sizes must match or be 1')
    N = max(Nh, Nt)

    inv_scale = None
    if model_name == 'RotatE':
        # Hoist the relation-phase transcendentals out of the kernel (tiny (B,1,h) work),
        # and replace the divide with a multiply.
        phase = relation.astype(jnp.float32) * (PI_ROTATE / float(embedding_range))
        relation = jnp.concatenate([jnp.cos(phase), jnp.sin(phase)], axis=-1)
    elif model_name == 'pRotatE':
        inv_scale = PI_PROTATE / float(embedding_range)

    vmem_cap, bf16_vpu = _chip_info()
    itemsize = jnp.dtype(head.dtype).itemsize
    compute_bf16 = bool(bf16_vpu and head.dtype == jnp.bfloat16)
    compute_dtype = jnp.bfloat16 if compute_bf16 else jnp.float32

    heavy = model_name in ('ComplEx', 'RotatE')
    both_streamed = (Nh > 1 and Nt > 1)
    TB, TN, vmem_limit = _tile_plan(B, N, D, itemsize, compute_bf16=compute_bf16,
                                    heavy=heavy, both_streamed=both_streamed,
                                    vmem_cap=vmem_cap)
    grid = (pl.cdiv(B, TB), pl.cdiv(N, TN))

    d_half = D // 2
    # Lane-aligned re/im split: avoids in-kernel lane slicing (XLU relayout per step).
    split_reim = (heavy and D % 2 == 0 and d_half % 128 == 0
                  and relation.shape[2] == D)

    def big3(b, n):
        return (b, n, 0)

    def small3(b, n):
        return (b, 0, 0)

    if split_reim:
        def half_spec(is_big, half):
            if is_big:
                return pl.BlockSpec((TB, TN, d_half), lambda b, n, _h=half: (b, n, _h))
            return pl.BlockSpec((TB, 1, d_half), lambda b, n, _h=half: (b, 0, _h))
        in_specs = [half_spec(Nh > 1, 0), half_spec(Nh > 1, 1),
                    half_spec(False, 0), half_spec(False, 1),
                    half_spec(Nt > 1, 0), half_spec(Nt > 1, 1)]
        operands = (head, head, relation, relation, tail, tail)
    else:
        head_spec = pl.BlockSpec((TB, TN if Nh > 1 else 1, D),
                                 big3 if Nh > 1 else small3)
        rel_spec = pl.BlockSpec((TB, 1, relation.shape[2]), small3)
        tail_spec = pl.BlockSpec((TB, TN if Nt > 1 else 1, D),
                                 big3 if Nt > 1 else small3)
        in_specs = [head_spec, rel_spec, tail_spec]
        operands = (head, relation, tail)

    out_spec = pl.BlockSpec((TB, TN), lambda b, n: (b, n))

    kernel = functools.partial(
        _score_kernel, model_name=model_name, mode=mode,
        gamma=float(gamma), inv_scale=inv_scale,
        modulus=None if modulus is None else float(modulus),
        compute_dtype=compute_dtype, split_reim=split_reim)

    # Ragged edges: Pallas pads edge-block reads (garbage stays confined to its own row
    # since D is never tiled) and masks edge-block stores, so no wrapper padding/slicing.
    out = pl.pallas_call(
        kernel,
        out_shape=jax.ShapeDtypeStruct((B, N), jnp.float32),
        grid=grid,
        in_specs=in_specs,
        out_specs=out_spec,
        compiler_params=pltpu.CompilerParams(
            dimension_semantics=("parallel", "parallel"),
            vmem_limit_bytes=int(vmem_limit)),
    )(*operands)
    return out


# --------------------------------------------------------------- pure-JAX reference math
def reference_score(head, relation, tail, *, model_name, mode, gamma,
                    embedding_range, modulus=None):
    head = head.astype(jnp.float32)
    relation = relation.astype(jnp.float32)
    tail = tail.astype(jnp.float32)
    g, er = float(gamma), float(embedding_range)
    if model_name == 'TransE':
        s = head + (relation - tail) if mode == 'head-batch' else head + relation - tail
        return g - jnp.sum(jnp.abs(s), axis=2)
    if model_name == 'DistMult':
        s = head * (relation * tail) if mode == 'head-batch' else head * relation * tail
        return jnp.sum(s, axis=2)
    if model_name == 'ComplEx':
        d = head.shape[2] // 2
        re_h, im_h = head[:, :, :d], head[:, :, d:]
        re_r, im_r = relation[:, :, :d], relation[:, :, d:]
        re_t, im_t = tail[:, :, :d], tail[:, :, d:]
        if mode == 'head-batch':
            re_s = re_r * re_t + im_r * im_t
            im_s = re_r * im_t - im_r * re_t
            s = re_h * re_s + im_h * im_s
        else:
            re_s = re_h * re_r - im_h * im_r
            im_s = re_h * im_r + im_h * re_r
            s = re_s * re_t + im_s * im_t
        return jnp.sum(s, axis=2)
    if model_name == 'RotatE':
        d = head.shape[2] // 2
        re_h, im_h = head[:, :, :d], head[:, :, d:]
        re_t, im_t = tail[:, :, :d], tail[:, :, d:]
        ph_r = relation / (er / PI_ROTATE)
        re_r, im_r = jnp.cos(ph_r), jnp.sin(ph_r)
        if mode == 'head-batch':
            re_s = re_r * re_t + im_r * im_t - re_h
            im_s = re_r * im_t - im_r * re_t - im_h
        else:
            re_s = re_h * re_r - im_h * im_r - re_t
            im_s = re_h * im_r + im_h * re_r - im_t
        return g - jnp.sum(jnp.sqrt(re_s ** 2 + im_s ** 2), axis=2)
    if model_name == 'pRotatE':
        ph = head / (er / PI_PROTATE)
        pr = relation / (er / PI_PROTATE)
        pt = tail / (er / PI_PROTATE)
        s = ph + (pr - pt) if mode == 'head-batch' else ph + pr - pt
        return g - jnp.sum(jnp.abs(jnp.sin(s)), axis=2) * modulus
    raise ValueError(model_name)


# ---------------------------------------------------------------------------- "module"
class KGEModelPallas:
    def __init__(self, model_name, nentity, nrelation, nconcept, hidden_dim, gamma,
                 double_entity_embedding=False, double_relation_embedding=False,
                 seed=0, embedding_dtype=jnp.float32):
        if model_name not in ['TransE', 'DistMult', 'ComplEx', 'RotatE', 'pRotatE']:
            raise ValueError('model %s not supported' % model_name)
        if model_name == 'RotatE' and (not double_entity_embedding or double_relation_embedding):
            raise ValueError('RotatE should use --double_entity_embedding')
        if model_name == 'ComplEx' and (not double_entity_embedding or not double_relation_embedding):
            raise ValueError('ComplEx should use double entity and relation embedding')

        self.model_name = model_name
        self.nentity = nentity
        self.nrelation = nrelation
        self.hidden_dim = hidden_dim
        self.epsilon = 2.0
        self.alpha = 1.0
        self.gamma = float(gamma)
        self.embedding_range = (self.gamma + self.epsilon) / hidden_dim
        self.entity_dim = hidden_dim * 2 if double_entity_embedding else hidden_dim
        self.relation_dim = hidden_dim * 2 if double_relation_embedding else hidden_dim

        er = self.embedding_range
        k1, k2, k3, k4 = jax.random.split(jax.random.PRNGKey(seed), 4)
        self.entity_embedding = jax.random.uniform(
            k1, (nentity, self.entity_dim), jnp.float32, minval=-er, maxval=er
        ).astype(embedding_dtype)
        self.relation_embedding = jax.random.uniform(
            k2, (nrelation, self.relation_dim), jnp.float32, minval=-er, maxval=er
        ).astype(embedding_dtype)
        self.concept_embedding = jax.random.uniform(
            k3, (nconcept, self.entity_dim), jnp.float32, minval=-er, maxval=er
        ).astype(embedding_dtype)
        self.w = jax.random.uniform(
            k4, (1, nconcept), jnp.float32, minval=-er, maxval=er)
        self.A1 = jnp.zeros((nentity, self.entity_dim), embedding_dtype)
        self.A2 = jnp.zeros((nentity, self.entity_dim), embedding_dtype)
        self.P = jnp.ones((nentity, nentity), jnp.float32)
        self.modulus = 0.5 * er if model_name == 'pRotatE' else None

    # --- embedding gather glue (plain JAX); scoring runs in the Pallas kernel ---
    def _gather(self, sample, mode):
        if mode == 'single':
            head = self.entity_embedding[sample[:, 0]][:, None, :]
            relation = self.relation_embedding[sample[:, 1]][:, None, :]
            tail = self.entity_embedding[sample[:, 2]][:, None, :]
        elif mode == 'head-batch':
            tail_part, head_part = sample
            B, N = head_part.shape
            head = self.entity_embedding[head_part.reshape(-1)].reshape(B, N, -1)
            relation = self.relation_embedding[tail_part[:, 1]][:, None, :]
            tail = self.entity_embedding[tail_part[:, 2]][:, None, :]
        elif mode == 'tail-batch':
            head_part, tail_part = sample
            B, N = tail_part.shape
            head = self.entity_embedding[head_part[:, 0]][:, None, :]
            relation = self.relation_embedding[head_part[:, 1]][:, None, :]
            tail = self.entity_embedding[tail_part.reshape(-1)].reshape(B, N, -1)
        elif mode == 'head-batch-concept':
            tail_part, head_part = sample
            B, N = head_part.shape
            head = self.A1[head_part.reshape(-1)].reshape(B, N, -1)
            relation = self.relation_embedding[tail_part[:, 1]][:, None, :]
            tail = self.A1[tail_part[:, 2]][:, None, :]
        elif mode == 'tail-batch-concept':
            head_part, tail_part = sample
            B, N = tail_part.shape
            head = self.A1[head_part[:, 0]][:, None, :]
            relation = self.relation_embedding[head_part[:, 1]][:, None, :]
            tail = self.A1[tail_part.reshape(-1)].reshape(B, N, -1)
        else:
            raise ValueError('mode %s not supported' % mode)
        return head, relation, tail

    def forward(self, sample, mode='single'):
        if mode == 'concept-batch':
            # TODO(synk): concept-batch needs Entropic_WGW (wgw_loss) which is not in the module source.
            raise NotImplementedError('concept-batch requires the external Entropic_WGW module')
        head, relation, tail = self._gather(sample, mode)
        if mode == 'single':
            # N == 1: pallas_call fixed overhead + maximally-masked (B,1) stores dominate;
            # plain fused XLA is faster.
            return reference_score(head, relation, tail,
                                   model_name=self.model_name, mode=mode,
                                   gamma=self.gamma,
                                   embedding_range=self.embedding_range,
                                   modulus=self.modulus)
        return pallas_score(head, relation, tail,
                            model_name=self.model_name, mode=mode,
                            gamma=self.gamma,
                            embedding_range=self.embedding_range,
                            modulus=self.modulus)

    # pure-JAX reference (same math as the PyTorch module) for correctness checking
    def forward_reference(self, sample, mode='single'):
        head, relation, tail = self._gather(sample, mode)
        return reference_score(head, relation, tail,
                               model_name=self.model_name, mode=mode,
                               gamma=self.gamma,
                               embedding_range=self.embedding_range,
                               modulus=self.modulus)


# ------------------------------------------------------------------------------- main
if __name__ == "__main__":
    nentity, nrelation, nconcept = 64, 16, 8
    gamma = 12.0

    key = jax.random.PRNGKey(0)

    def make_samples(k, B, N):
        k1, k2, k3, k4 = jax.random.split(k, 4)
        pos = jnp.stack([
            jax.random.randint(k1, (B,), 0, nentity),
            jax.random.randint(k2, (B,), 0, nrelation),
            jax.random.randint(k3, (B,), 0, nentity),
        ], axis=1)                                                # (B, 3)
        neg = jax.random.randint(k4, (B, N), 0, nentity)          # (B, N)
        return pos, neg

    pos_s, neg_s = make_samples(jax.random.fold_in(key, 1), 2, 8)
    pos_l, neg_l = make_samples(jax.random.fold_in(key, 2), 16, 200)

    # (name, hidden_dim, dtype, kwargs, also_run_large)
    configs = [
        ('RotatE',   32, jnp.float32,  dict(double_entity_embedding=True), False),
        ('TransE',   32, jnp.float32,  dict(), True),
        ('DistMult', 32, jnp.float32,  dict(), False),
        ('ComplEx',  32, jnp.float32,  dict(double_entity_embedding=True,
                                            double_relation_embedding=True), False),
        ('pRotatE',  32, jnp.float32,  dict(), False),
        # d = D/2 multiple of 128 -> exercises the lane-aligned re/im split BlockSpec path
        ('RotatE',  128, jnp.float32,  dict(double_entity_embedding=True), True),
        ('ComplEx', 128, jnp.float32,  dict(double_entity_embedding=True,
                                            double_relation_embedding=True), True),
        # bf16 embeddings (bf16 elementwise compute on v6e/v7x, f32 fallback elsewhere)
        ('TransE',   32, jnp.bfloat16, dict(), False),
        ('pRotatE',  32, jnp.bfloat16, dict(), False),
        ('RotatE',  128, jnp.bfloat16, dict(double_entity_embedding=True), True),
    ]

    ok = True
    for name, hidden_dim, dt, kw, use_large in configs:
        model = KGEModelPallas(name, nentity, nrelation, nconcept, hidden_dim, gamma,
                               embedding_dtype=dt, **kw)
        cases = [('single', pos_s),
                 ('tail-batch', (pos_s, neg_s)),
                 ('head-batch', (pos_s, neg_s))]
        if use_large:
            cases += [('tail-batch', (pos_l, neg_l)),
                      ('head-batch', (pos_l, neg_l))]
        if dt == jnp.bfloat16:
            rtol, atol = 5e-2, 6e-1   # loose: bf16 elementwise path vs f32 reference
        else:
            rtol, atol = 1e-4, 1e-3
        for mode, sample in cases:
            out = model.forward(sample, mode=mode)
            jax.block_until_ready(out)
            ref = model.forward_reference(sample, mode=mode)
            o, r = np.asarray(out), np.asarray(ref)
            if o.shape != r.shape or not np.allclose(o, r, rtol=rtol, atol=atol):
                ok = False
                err = float(np.max(np.abs(o - r))) if o.shape == r.shape else float('nan')
                print(f"MISMATCH {name} h={hidden_dim} dtype={np.dtype(dt).name} "
                      f"{mode} shape={o.shape}: max abs err {err}")

    if ok:
        print("KERNEL_OK")
</pallas_src>

<mosaic_0001>
module attributes {stable_mosaic.version = 11 : i64} {
  func.func @_score_kernel(%arg0: i32, %arg1: i32, %arg2: memref<2x1x64xf32, #tpu.memory_space<vmem>>, %arg3: memref<2x1x64xf32, #tpu.memory_space<vmem>>, %arg4: memref<2x8x64xf32, #tpu.memory_space<vmem>>, %arg5: memref<2x8xf32, #tpu.memory_space<vmem>>) attributes {dimension_semantics = [#tpu.dimension_semantics<parallel>, #tpu.dimension_semantics<parallel>], iteration_bounds = array<i64: 1, 1>, scalar_prefetch = 0 : i64, scratch_operands = 0 : i64, tpu.core_type = #tpu.core_type<tc>, window_params = [{transform_indices = @transform_0, window_bounds = array<i64: 2, 1, 64>}, {transform_indices = @transform_1, window_bounds = array<i64: 2, 1, 64>}, {transform_indices = @transform_2, window_bounds = array<i64: 2, 8, 64>}, {transform_indices = @transform_3, window_bounds = array<i64: 2, 8>}]} {
    %c0 = arith.constant 0 : index
    %c0_0 = arith.constant 0 : index
    %c0_1 = arith.constant 0 : index
    %0 = vector.load %arg2[%c0, %c0_0, %c0_1] : memref<2x1x64xf32, #tpu.memory_space<vmem>>, vector<2x1x64xf32>
    %c0_2 = arith.constant 0 : index
    %c0_3 = arith.constant 0 : index
    %c0_4 = arith.constant 0 : index
    %1 = vector.load %arg3[%c0_2, %c0_3, %c0_4] : memref<2x1x64xf32, #tpu.memory_space<vmem>>, vector<2x1x64xf32>
    %c0_5 = arith.constant 0 : index
    %c0_6 = arith.constant 0 : index
    %c0_7 = arith.constant 0 : index
    %2 = vector.load %arg4[%c0_5, %c0_6, %c0_7] : memref<2x8x64xf32, #tpu.memory_space<vmem>>, vector<2x8x64xf32>
    %3 = vector.extract_strided_slice %0 {offsets = [0, 0, 0], sizes = [2, 1, 32], strides = [1, 1, 1]} : vector<2x1x64xf32> to vector<2x1x32xf32>
    %4 = vector.extract_strided_slice %0 {offsets = [0, 0, 32], sizes = [2, 1, 32], strides = [1, 1, 1]} : vector<2x1x64xf32> to vector<2x1x32xf32>
    %5 = vector.extract_strided_slice %2 {offsets = [0, 0, 0], sizes = [2, 8, 32], strides = [1, 1, 1]} : vector<2x8x64xf32> to vector<2x8x32xf32>
    %6 = vector.extract_strided_slice %2 {offsets = [0, 0, 32], sizes = [2, 8, 32], strides = [1, 1, 1]} : vector<2x8x64xf32> to vector<2x8x32xf32>
    %7 = vector.extract_strided_slice %1 {offsets = [0, 0, 0], sizes = [2, 1, 32], strides = [1, 1, 1]} : vector<2x1x64xf32> to vector<2x1x32xf32>
    %8 = vector.extract_strided_slice %1 {offsets = [0, 0, 32], sizes = [2, 1, 32], strides = [1, 1, 1]} : vector<2x1x64xf32> to vector<2x1x32xf32>
    %9 = arith.mulf %3, %7 : vector<2x1x32xf32>
    %10 = arith.mulf %4, %8 : vector<2x1x32xf32>
    %11 = arith.subf %9, %10 : vector<2x1x32xf32>
    %12 = vector.broadcast %11 : vector<2x1x32xf32> to vector<2x8x32xf32>
    %13 = arith.subf %12, %5 : vector<2x8x32xf32>
    %14 = arith.mulf %3, %8 : vector<2x1x32xf32>
    %15 = arith.mulf %4, %7 : vector<2x1x32xf32>
    %16 = arith.addf %14, %15 : vector<2x1x32xf32>
    %17 = vector.broadcast %16 : vector<2x1x32xf32> to vector<2x8x32xf32>
    %18 = arith.subf %17, %6 : vector<2x8x32xf32>
    %19 = arith.mulf %13, %13 : vector<2x8x32xf32>
    %20 = arith.mulf %18, %18 : vector<2x8x32xf32>
    %21 = arith.addf %19, %20 : vector<2x8x32xf32>
    %22 = math.sqrt %21 : vector<2x8x32xf32>
    %cst = arith.constant dense<0.000000e+00> : vector<2x8xf32>
    %23 = vector.multi_reduction <add>, %22, %cst [2] : vector<2x8x32xf32> to vector<2x8xf32>
    %cst_8 = arith.constant 1.200000e+01 : f32
    %24 = vector.broadcast %cst_8 : f32 to vector<2x8xf32>
    %25 = arith.subf %24, %23 : vector<2x8xf32>
    %c0_9 = arith.constant 0 : index
    %c0_10 = arith.constant 0 : index
    %26 = vector.load %arg5[%c0_9, %c0_10] : memref<2x8xf32, #tpu.memory_space<vmem>>, vector<2x8xf32>
    tpu.vector_store %arg5[%c0_9, %c0_10], %25 {strides = array<i32>} : memref<2x8xf32, #tpu.memory_space<vmem>>, vector<2x8xf32>,
    return
  }
  func.func @transform_0(%arg0: i32, %arg1: i32) -> (i32, i32, i32) {
    %c0_i32 = arith.constant 0 : i32
    %c0_i32_0 = arith.constant 0 : i32
    %c0_i32_1 = arith.constant 0 : i32
    return %arg0, %c0_i32, %c0_i32_0 : i32, i32, i32
  }
  func.func @transform_1(%arg0: i32, %arg1: i32) -> (i32, i32, i32) {
    %c0_i32 = arith.constant 0 : i32
    %c0_i32_0 = arith.constant 0 : i32
    %c0_i32_1 = arith.constant 0 : i32
    return %arg0, %c0_i32, %c0_i32_0 : i32, i32, i32
  }
  func.func @transform_2(%arg0: i32, %arg1: i32) -> (i32, i32, i32) {
    %c0_i32 = arith.constant 0 : i32
    %c0_i32_0 = arith.constant 0 : i32
    return %arg0, %arg1, %c0_i32 : i32, i32, i32
  }
  func.func @transform_3(%arg0: i32, %arg1: i32) -> (i32, i32) {
    %c0_i32 = arith.constant 0 : i32
    return %arg0, %arg1 : i32, i32
  }
}

</mosaic_0001>

<llo_original>
// kernel: tpu_custom_call.1
$region0: #{tpu_custom_call.1}
  #allocation0 [shape = 'u32[]', space=smem, size = 0x4, offset = 0x4, fixed_abs, tag = 'smem constant byte address 0x4 - core index']
  #allocation1 [shape = 'u32[72,128]{1,0:T(1,128)}', space=vmem, size = 0x9000, scoped, tag = 'internal scratch']
  %s0 = inlined_call_operand.hbm [shape: f32[2,1,64], index: 0, kind: input, shape index: {}]
  %s1 = inlined_call_operand.hbm [shape: f32[2,1,64], index: 1, kind: input, shape index: {}]
  %s2 = inlined_call_operand.hbm [shape: f32[2,8,64], index: 2, kind: input, shape index: {}]
  %s3 = inlined_call_operand.hbm [shape: f32[2,8], index: 3, kind: output, shape index: {}]
  %s4 = sld [smem:[#allocation0]]
  $region34: #{tpu_custom_call.1} parent=0
    _
  %s6 = ssub.s32 1, %s4
  %s7 = scalar_select 0, %s6, %s4
  $region1: #{tpu_custom_call.1} parent=0
    #allocation2 [shape = 'u8[1024]{0}', space=vmem, size = 0x400, scoped, tag = 'input window, operand 0, single buffered']
    #allocation3 [shape = 's32[1]{0}', space=sflag, size = 0x4, scoped, tag = 'scoped memory for tpu_custom_call.1']
    #allocation4 [shape = 's32[1]{0}', space=sflag, size = 0x4, scoped, tag = 'scoped memory for tpu_custom_call.1']
    #allocation5 [shape = 'u8[1024]{0}', space=vmem, size = 0x400, scoped, tag = 'input window, operand 1, single buffered']
    #allocation6 [shape = 's32[1]{0}', space=sflag, size = 0x4, scoped, tag = 'scoped memory for tpu_custom_call.1']
    #allocation7 [shape = 'u8[8192]{0}', space=vmem, size = 0x2000, scoped, tag = 'input window, operand 2, single buffered']
    #allocation8 [shape = 'u8[1024]{0}', space=vmem, size = 0x400, scoped, tag = 'output window, operand 0, single buffered']
    %8 = vsyncpa [#allocation3], 0
    %9 = vsyncpa [#allocation6], 0
    %10 = vsyncpa [#allocation4], 0
    // Predicated region
    $region2: #{tpu_custom_call.1} parent=1 // pred_check
      _
    $region3: #{tpu_custom_call.1} parent=1 // pred_check_branch
      %12 = sbr.rel (0) target = $region5
    $region4: #{tpu_custom_call.1} parent=1 // pred_region
      %14 = vsyncadd [#allocation3], 0
      %s15 = sshll.u32 %s0, 4
      %s16 = int_to_ptr.hbm [resolvable:$true] %s15
      %s17 = sshll.u32 [#allocation2], 4
      %s18 = int_to_ptr.vmem [resolvable:$true] %s17
      %23 = dma.hbm_to_vmem [thread:$0]  %s16, 32, %s18, [#allocation3], 16, 16, 1
    $region5: #{tpu_custom_call.1} parent=1 // pred_fallthru
      _
    // Predicated region
    $region6: #{tpu_custom_call.1} parent=1 // pred_check
      _
    $region7: #{tpu_custom_call.1} parent=1 // pred_check_branch
      %25 = sbr.rel (0) target = $region9
    $region8: #{tpu_custom_call.1} parent=1 // pred_region
      %27 = vsyncadd [#allocation6], 0
      %s28 = sshll.u32 %s1, 4
      %s29 = int_to_ptr.hbm [resolvable:$true] %s28
      %s30 = sshll.u32 [#allocation5], 4
      %s31 = int_to_ptr.vmem [resolvable:$true] %s30
      %36 = dma.hbm_to_vmem [thread:$0]  %s29, 32, %s31, [#allocation6], 16, 16, 1
    $region9: #{tpu_custom_call.1} parent=1 // pred_fallthru
      _
    // Predicated region
    $region10: #{tpu_custom_call.1} parent=1 // pred_check
      _
    $region11: #{tpu_custom_call.1} parent=1 // pred_check_branch
      %38 = sbr.rel (0) target = $region13
    $region12: #{tpu_custom_call.1} parent=1 // pred_region
      %40 = vsyncadd [#allocation6], 0
      %s41 = sshll.u32 %s2, 4
      %s42 = int_to_ptr.hbm [resolvable:$true] %s41
      %s43 = sshll.u32 [#allocation7], 4
      %s44 = int_to_ptr.vmem [resolvable:$true] %s43
      %49 = dma.hbm_to_vmem [thread:$0]  %s42, 256, %s44, [#allocation6], 128, 128, 8
    $region13: #{tpu_custom_call.1} parent=1 // pred_fallthru
      _
    // Predicated region
    $region14: #{tpu_custom_call.1} parent=1 // pred_check
      _
    $region15: #{tpu_custom_call.1} parent=1 // pred_check_branch
      %51 = sbr.rel (0) target = $region17
    $region16: #{tpu_custom_call.1} parent=1 // pred_region
      %53 = dma.done [#allocation3], 32
    $region17: #{tpu_custom_call.1} parent=1 // pred_fallthru
      _
    // Predicated region
    $region18: #{tpu_custom_call.1} parent=1 // pred_check
      _
    $region19: #{tpu_custom_call.1} parent=1 // pred_check_branch
      %55 = sbr.rel (0) target = $region21
    $region20: #{tpu_custom_call.1} parent=1 // pred_region
      %57 = dma.done [#allocation6], 32
    $region21: #{tpu_custom_call.1} parent=1 // pred_fallthru
      _
    // Predicated region
    $region22: #{tpu_custom_call.1} parent=1 // pred_check
      _
    $region23: #{tpu_custom_call.1} parent=1 // pred_check_branch
      %59 = sbr.rel (0) target = $region25
    $region24: #{tpu_custom_call.1} parent=1 // pred_region
      %61 = dma.done [#allocation6], 256
    $region25: #{tpu_custom_call.1} parent=1 // pred_fallthru
      _
    %v62 = vld [vmem:[#allocation2] sm:$0x1]
    %v63 = vld [vmem:[#allocation2 + $0x1] sm:$0x1]
    %v64 = vld [vmem:[#allocation5] sm:$0x1]
    %v65 = vld [vmem:[#allocation5 + $0x1] sm:$0x1]
    %v66 = vld [vmem:[#allocation7] sm:$0xff]
    %v67 = vld [vmem:[#allocation7 + $0x8] sm:$0xff]
    %v68 = vmul.f32 %v62, %v64
    %v69 = vmul.f32 %v63, %v65
    %72 = vrot.lane.b32.xlu0 %v68, 96
    %v73 = vpop.permute.xlu0 %72
    %74 = vrot.lane.b32.xlu0 %v69, 96
    %v75 = vpop.permute.xlu0 %74
    %v78 = vsub.f32 %v68, %v73
    %v79 = vsub.f32 %v69, %v75
    %v82 = vperm.slane %v78, 0
    %v83 = vperm.slane %v79, 0
    %v86 = vsub.f32 %v82, %v66
    %v87 = vsub.f32 %v83, %v67
    %90 = vrot.lane.b32.xlu0 %v64, 96
    %v91 = vpop.permute.xlu0 %90
    %92 = vrot.lane.b32.xlu0 %v65, 96
    %v93 = vpop.permute.xlu0 %92
    %v96 = vmul.f32 %v62, %v91
    %v97 = vmul.f32 %v63, %v93
    %98 = vrot.lane.b32.xlu0 %v64, 32
    %v99 = vpop.permute.xlu0 %98
    %100 = vrot.lane.b32.xlu0 %v65, 32
    %v101 = vpop.permute.xlu0 %100
    %v104 = vmul.f32 %v62, %v99
    %v105 = vmul.f32 %v63, %v101
    %108 = vrot.lane.b32.xlu0 %v104, 96
    %v109 = vpop.permute.xlu0 %108
    %110 = vrot.lane.b32.xlu0 %v105, 96
    %v111 = vpop.permute.xlu0 %110
    %v114 = vadd.f32 %v96, %v109
    %v115 = vadd.f32 %v97, %v111
    %v118 = vperm.slane %v114, 0
    %v119 = vperm.slane %v115, 0
    %124 = vrot.lane.b32.xlu0 %v66, 96
    %v125 = vpop.permute.xlu0 %124
    %126 = vrot.lane.b32.xlu0 %v67, 96
    %v127 = vpop.permute.xlu0 %126
    %v130 = vsub.f32 %v118, %v125
    %v131 = vsub.f32 %v119, %v127
    %v132 = vmul.f32 %v86, %v86
    %v133 = vmul.f32 %v87, %v87
    %v134 = vmul.f32 %v130, %v130
    %v135 = vmul.f32 %v131, %v131
    %v136 = vadd.f32 %v132, %v134
    %v137 = vadd.f32 %v133, %v135
    %v138 = vrsqrt.pop %v136
    %v139 = vmul.f32 %v138, %v136
    %v140 = vmul.f32 %v139, %v138
    %v141 = vmul.f32 0.5, %v140
    %v142 = vsub.f32 1.5, %v141
    %v143 = vmul.f32 %v138, %v142
    %v144 = vmul.f32 %v136, %v143
    %vm145 = vcmp.eq.f32.partialorder %v136, inf
    %v146 = vsel %vm145, %v136, %v144
    %vm147 = vcmp.eq.f32.partialorder %v136, 0.0
    %v148 = vand.u32 %v136, 2147483648
    %v149 = vsel %vm147, %v148, %v146
    %v150 = vrsqrt.pop %v137
    %v151 = vmul.f32 %v150, %v137
    %v152 = vmul.f32 %v151, %v150
    %v153 = vmul.f32 0.5, %v152
    %v154 = vsub.f32 1.5, %v153
    %v155 = vmul.f32 %v150, %v154
    %v156 = vmul.f32 %v137, %v155
    %vm157 = vcmp.eq.f32.partialorder %v137, inf
    %v158 = vsel %vm157, %v137, %v156
    %vm159 = vcmp.eq.f32.partialorder %v137, 0.0
    %v160 = vand.u32 %v137, 2147483648
    %v161 = vsel %vm159, %v160, %v158
    %vm162 = vcmask 261120
    %v163 = vsel %vm162, %v149, 0.0
    %164 = vadd.xlane.f32.xlu0 %v163
    %v165 = vpop.xlane.xlu0 %164
    %v166 = vsel %vm162, %v161, 0.0
    %167 = vadd.xlane.f32.xlu0 %v166
    %v168 = vpop.xlane.xlu0 %167
    %v169 = vsub.f32 12.0, %v165
    %v170 = vsub.f32 12.0, %v168
    %v173 = vlaneseq
    %v174 = vand.u32 %v173, 127
    %v175 = vperm.slane %v169, %v174
    %v176 = vperm.slane %v170, %v174
    %vm177 = vcmask 1041409
    %v178 = vsel %vm177, %v176, %v175
    %vm180 = vcmask 58368
    %181 = vst.msk [vmem:[#allocation8] sm:$0x3] %vm180, %v178
    // Predicated region
    $region26: #{tpu_custom_call.1} parent=1 // pred_check
      _
    $region27: #{tpu_custom_call.1} parent=1 // pred_check_branch
      %183 = sbr.rel (0) target = $region29
    $region28: #{tpu_custom_call.1} parent=1 // pred_region
      %185 = vsyncadd [#allocation4], 0
      %s187 = sshll.u32 [#allocation8], 4
      %s188 = int_to_ptr.vmem [resolvable:$true] %s187
      %s189 = sshll.u32 %s3, 4
      %s190 = int_to_ptr.hbm [resolvable:$true] %s189
      %192 = dma.vmem_to_hbm [thread:$0]  %s188, 32, %s190, [#allocation4]
    $region29: #{tpu_custom_call.1} parent=1 // pred_fallthru
      _
    // Predicated region
    $region30: #{tpu_custom_call.1} parent=1 // pred_check
      _
    $region31: #{tpu_custom_call.1} parent=1 // pred_check_branch
      %194 = sbr.rel (0) target = $region33
    $region32: #{tpu_custom_call.1} parent=1 // pred_region
      %196 = dma.done [#allocation4], 32
    $region33: #{tpu_custom_call.1} parent=1 // pred_fallthru
      _
    %197 = vsyncpa [#allocation3], 1
    %198 = vsyncpa [#allocation6], 1
    %199 = vsyncpa [#allocation4], 1

</llo_original>
